<compile_context>
chip_gen: v5e
topology: v5e:2x2
jax: 0.10.0
libtpu: 0.0.40
codegen_flags: <defaults>
</compile_context>

<pallas_src>
import jax
import jax.numpy as jnp
from jax.experimental import pallas as pl
from jax.experimental.pallas import tpu as pltpu

LANE = 128


def _round_up(n, m=LANE):
    return ((n + m - 1) // m) * m


def _pad_axis(a, target, axis):
    pad = target - a.shape[axis]
    if pad == 0:
        return a
    widths = [(0, 0)] * a.ndim
    widths[axis] = (0, pad)
    return jnp.pad(a, widths)


def _choose_tile_b(B, cap=512):
    """Pick the batch tile.

    If the whole batch fits one tile (B <= cap) use a single grid step: the block
    equals the full array dim (no divisibility constraint) and the fixed per-step
    overhead is paid exactly once. Otherwise pick the largest divisor of B <= cap
    that is a multiple of 16 (native bf16 sublane tile), falling back to 8.
    """
    if B <= cap:
        return B
    for multiple in (16, 8):
        cands = [t for t in range(multiple, cap + 1, multiple) if B % t == 0]
        if cands:
            return max(cands)
    raise ValueError(f"batch={B} has no multiple-of-8 divisor <= {cap}")


def _autoencoder_kernel(x_ref,
                        w1_ref, b1_ref,
                        w2_ref, b2_ref,
                        w3_ref, b3_ref,
                        w4_ref, b4_ref,
                        o_ref):
    """Fused forward. MXU matmuls in the weights' dtype with f32 accumulation;
    bias add / ReLU / tanh run in the biases' dtype (bf16 on v6e/v7x, f32 on v5e).
    Zero-padded lanes stay exactly zero through every layer."""
    cd = w1_ref.dtype   # MXU operand dtype (bf16 by default)
    ed = b1_ref.dtype   # elementwise (VPU / EUP) dtype

    h = x_ref[...].astype(cd)                                   # in-kernel cast of x
    h = jnp.dot(h, w1_ref[...], preferred_element_type=jnp.float32)
    h = jnp.maximum(h.astype(ed) + b1_ref[...], 0).astype(cd)   # fused bias+ReLU+cast

    h = jnp.dot(h, w2_ref[...], preferred_element_type=jnp.float32)
    h = jnp.maximum(h.astype(ed) + b2_ref[...], 0).astype(cd)

    h = jnp.dot(h, w3_ref[...], preferred_element_type=jnp.float32)
    h = jnp.maximum(h.astype(ed) + b3_ref[...], 0).astype(cd)

    h = jnp.dot(h, w4_ref[...], preferred_element_type=jnp.float32)
    o_ref[...] = jnp.tanh(h.astype(ed) + b4_ref[...]).astype(o_ref.dtype)


def prepare_params(params, *, compute_dtype=jnp.bfloat16,
                   elementwise_dtype=jnp.bfloat16):
    """One-time prep: pad every hidden/output feature dim up to 128 lanes, cast
    weights to compute_dtype and biases to elementwise_dtype.
    w1's input dim is left unpadded (x is passed unpadded).
    On v5e pass elementwise_dtype=jnp.float32 (no bf16 VPU/EUP there)."""
    prepared = []
    for idx in range(1, 5):
        w = params[f"w{idx}"]
        b = params[f"b{idx}"]
        in_dim = w.shape[0] if idx == 1 else _round_up(w.shape[0])
        out_dim = _round_up(w.shape[1])
        wp = _pad_axis(_pad_axis(w, in_dim, 0), out_dim, 1).astype(compute_dtype)
        bp = _pad_axis(b, out_dim, 1).astype(elementwise_dtype)
        prepared += [wp, bp]
    return tuple(prepared)


def autoencoder_forward(x, prepared, *, tile_b=None, out_dtype=jnp.float32):
    """x: [B, input_dim] float32 (unpadded). prepared: output of prepare_params."""
    B, D_in = x.shape
    w1 = prepared[0]
    assert w1.shape[0] == D_in, "prepared params do not match input_dim"
    D_out_pad = prepared[-2].shape[1]   # w4 padded output dim (== round_up(input_dim))

    if tile_b is None:
        tile_b = _choose_tile_b(B)
    assert B % tile_b == 0, "batch must be a multiple of tile_b"
    grid = (B // tile_b,)

    def resident_spec(shape):
        # whole-array block, constant block index -> stays resident across steps
        return pl.BlockSpec(shape, lambda i, _n=len(shape): (0,) * _n)

    in_specs = [pl.BlockSpec((tile_b, D_in), lambda i: (i, 0))]   # x tile over batch
    for a in prepared:
        in_specs.append(resident_spec(a.shape))
    out_specs = pl.BlockSpec((tile_b, D_out_pad), lambda i: (i, 0))

    x_bytes = x.dtype.itemsize
    out_bytes = jnp.dtype(out_dtype).itemsize
    resident_bytes = sum(int(a.size) * a.dtype.itemsize for a in prepared)

    # VMEM budget: double-buffered x/out tiles + (default double-buffered) resident
    # weights/biases + room for in-flight f32 activations, with headroom; capped at
    # 64 MiB so the same number is valid on v7x.
    tile_bytes = tile_b * D_in * x_bytes + tile_b * D_out_pad * out_bytes
    act_bytes = 4 * tile_b * D_out_pad * 4
    vmem_limit = int(2 * tile_bytes + 2 * resident_bytes + act_bytes + (4 << 20))
    vmem_limit = int(min(max(vmem_limit, 8 << 20), 64 << 20))

    flops = 2 * B * sum(int(prepared[2 * i].shape[0]) * int(prepared[2 * i].shape[1])
                        for i in range(4))
    bytes_accessed = (B * D_in * x_bytes          # x (read as-is, cast in kernel)
                      + resident_bytes            # weights + biases (read once)
                      + B * D_out_pad * out_bytes)  # output
    cost = pl.CostEstimate(flops=int(flops),
                           transcendentals=int(B * D_out_pad),   # tanh
                           bytes_accessed=int(bytes_accessed))

    out_pad = pl.pallas_call(
        _autoencoder_kernel,
        out_shape=jax.ShapeDtypeStruct((B, D_out_pad), out_dtype),
        grid_spec=pltpu.PrefetchScalarGridSpec(
            num_scalar_prefetch=0,
            grid=grid,
            in_specs=in_specs,
            out_specs=out_specs,
        ),
        compiler_params=pltpu.CompilerParams(
            dimension_semantics=("parallel",),
            vmem_limit_bytes=vmem_limit),
        cost_estimate=cost,
    )(x, *prepared)

    # Slice the zero-padded lanes back off (output dim == input dim for the AE).
    return out_pad[:, :D_in]


def init_params(key, input_dim, encoding_dim):
    """Deterministic init matching PyTorch nn.Linear default (uniform +-1/sqrt(fan_in)).
    Weights stored as [in, out], biases as [1, out], all float32."""
    dims = [
        (input_dim, encoding_dim * 2),     # encoder L1
        (encoding_dim * 2, encoding_dim),  # encoder L2
        (encoding_dim, encoding_dim * 2),  # decoder L1
        (encoding_dim * 2, input_dim),     # decoder L2
    ]
    params = {}
    for idx, (fan_in, fan_out) in enumerate(dims, start=1):
        key, kw, kb = jax.random.split(key, 3)
        bound = 1.0 / (fan_in ** 0.5)
        params[f"w{idx}"] = jax.random.uniform(
            kw, (fan_in, fan_out), jnp.float32, -bound, bound)
        params[f"b{idx}"] = jax.random.uniform(
            kb, (1, fan_out), jnp.float32, -bound, bound)
    return params


def reference_forward(x, params, compute_dtype=jnp.float32,
                      elementwise_dtype=jnp.float32):
    """Plain-JAX reference, optionally mirroring the kernel's dtype choices."""
    def lin(h, w, b):
        acc = jnp.dot(h.astype(compute_dtype), w.astype(compute_dtype),
                      preferred_element_type=jnp.float32)
        return acc.astype(elementwise_dtype) + b.astype(elementwise_dtype)
    h = jnp.maximum(lin(x, params["w1"], params["b1"]), 0)
    h = jnp.maximum(lin(h, params["w2"], params["b2"]), 0)
    h = jnp.maximum(lin(h, params["w3"], params["b3"]), 0)
    return jnp.tanh(lin(h, params["w4"], params["b4"])).astype(jnp.float32)


if __name__ == "__main__":
    INPUT_DIM = 32
    ENCODING_DIM = 8
    BATCH = 16

    key = jax.random.PRNGKey(0)
    key_x, key_p = jax.random.split(key)

    x = jax.random.normal(key_x, (BATCH, INPUT_DIM), jnp.float32)
    params = init_params(key_p, INPUT_DIM, ENCODING_DIM)

    # One-time weight/bias prep (pad to 128 lanes + cast); reused across calls.
    prepared = prepare_params(params)   # bf16 matmuls + bf16 elementwise (v6e/v7x)

    out = autoencoder_forward(x, prepared)
    out = jax.block_until_ready(out)

    ref_bf16 = reference_forward(x, params, compute_dtype=jnp.bfloat16,
                                 elementwise_dtype=jnp.bfloat16)
    ref_f32 = reference_forward(x, params)

    assert out.shape == (BATCH, INPUT_DIM)
    # Matches a reference doing the identical bf16-operand / f32-accum math.
    assert jnp.allclose(out, ref_bf16, atol=2e-2, rtol=0), "mismatch vs bf16 reference"
    # Close to full-f32 math (tanh output is bounded in [-1, 1]).
    assert jnp.allclose(out, ref_f32, atol=5e-2, rtol=0), "mismatch vs f32 reference"

    print("KERNEL_OK")
</pallas_src>

<mosaic_0001>
module attributes {stable_mosaic.version = 11 : i64} {
  func.func @_autoencoder_kernel(%arg0: i32, %arg1: memref<16x32xf32, #tpu.memory_space<vmem>>, %arg2: memref<32x128xbf16, #tpu.memory_space<vmem>>, %arg3: memref<1x128xbf16, #tpu.memory_space<vmem>>, %arg4: memref<128x128xbf16, #tpu.memory_space<vmem>>, %arg5: memref<1x128xbf16, #tpu.memory_space<vmem>>, %arg6: memref<128x128xbf16, #tpu.memory_space<vmem>>, %arg7: memref<1x128xbf16, #tpu.memory_space<vmem>>, %arg8: memref<128x128xbf16, #tpu.memory_space<vmem>>, %arg9: memref<1x128xbf16, #tpu.memory_space<vmem>>, %arg10: memref<16x128xf32, #tpu.memory_space<vmem>>) attributes {dimension_semantics = [#tpu.dimension_semantics<parallel>], iteration_bounds = array<i64: 1>, scalar_prefetch = 0 : i64, scratch_operands = 0 : i64, tpu.core_type = #tpu.core_type<tc>, window_params = [{transform_indices = @transform_0, window_bounds = array<i64: 16, 32>}, {pipeline_mode = #tpu.pipeline_mode<synchronous>, transform_indices = @transform_1, window_bounds = array<i64: 32, 128>}, {pipeline_mode = #tpu.pipeline_mode<synchronous>, transform_indices = @transform_2, window_bounds = array<i64: 1, 128>}, {pipeline_mode = #tpu.pipeline_mode<synchronous>, transform_indices = @transform_3, window_bounds = array<i64: 128, 128>}, {pipeline_mode = #tpu.pipeline_mode<synchronous>, transform_indices = @transform_4, window_bounds = array<i64: 1, 128>}, {pipeline_mode = #tpu.pipeline_mode<synchronous>, transform_indices = @transform_5, window_bounds = array<i64: 128, 128>}, {pipeline_mode = #tpu.pipeline_mode<synchronous>, transform_indices = @transform_6, window_bounds = array<i64: 1, 128>}, {pipeline_mode = #tpu.pipeline_mode<synchronous>, transform_indices = @transform_7, window_bounds = array<i64: 128, 128>}, {pipeline_mode = #tpu.pipeline_mode<synchronous>, transform_indices = @transform_8, window_bounds = array<i64: 1, 128>}, {transform_indices = @transform_9, window_bounds = array<i64: 16, 128>}]} {
    %c0 = arith.constant 0 : index
    %c0_0 = arith.constant 0 : index
    %0 = vector.load %arg1[%c0, %c0_0] : memref<16x32xf32, #tpu.memory_space<vmem>>, vector<16x32xf32>
    %1 = arith.truncf %0 : vector<16x32xf32> to vector<16x32xbf16>
    %c0_1 = arith.constant 0 : index
    %c0_2 = arith.constant 0 : index
    %2 = vector.load %arg2[%c0_1, %c0_2] : memref<32x128xbf16, #tpu.memory_space<vmem>>, vector<32x128xbf16>
    %cst = arith.constant dense<0.000000e+00> : vector<16x128xf32>
    %3 = tpu.matmul %1, %2, %cst {dimension_numbers = #tpu.dot_dimension_numbers<[1], [0], [0], [1], [0, 0, 1, 1], [], []>} : vector<16x32xbf16>, vector<32x128xbf16>, vector<16x128xf32> -> vector<16x128xf32>
    %4 = arith.truncf %3 : vector<16x128xf32> to vector<16x128xbf16>
    %c0_3 = arith.constant 0 : index
    %c0_4 = arith.constant 0 : index
    %5 = vector.load %arg3[%c0_3, %c0_4] : memref<1x128xbf16, #tpu.memory_space<vmem>>, vector<1x128xbf16>
    %6 = vector.broadcast %5 : vector<1x128xbf16> to vector<16x128xbf16>
    %7 = arith.addf %4, %6 : vector<16x128xbf16>
    %cst_5 = arith.constant 0.000000e+00 : bf16
    %8 = vector.broadcast %cst_5 : bf16 to vector<16x128xbf16>
    %9 = arith.maximumf %7, %8 : vector<16x128xbf16>
    %c0_6 = arith.constant 0 : index
    %c0_7 = arith.constant 0 : index
    %10 = vector.load %arg4[%c0_6, %c0_7] : memref<128x128xbf16, #tpu.memory_space<vmem>>, vector<128x128xbf16>
    %cst_8 = arith.constant dense<0.000000e+00> : vector<16x128xf32>
    %11 = tpu.matmul %9, %10, %cst_8 {dimension_numbers = #tpu.dot_dimension_numbers<[1], [0], [0], [1], [0, 0, 1, 1], [], []>} : vector<16x128xbf16>, vector<128x128xbf16>, vector<16x128xf32> -> vector<16x128xf32>
    %12 = arith.truncf %11 : vector<16x128xf32> to vector<16x128xbf16>
    %c0_9 = arith.constant 0 : index
    %c0_10 = arith.constant 0 : index
    %13 = vector.load %arg5[%c0_9, %c0_10] : memref<1x128xbf16, #tpu.memory_space<vmem>>, vector<1x128xbf16>
    %14 = vector.broadcast %13 : vector<1x128xbf16> to vector<16x128xbf16>
    %15 = arith.addf %12, %14 : vector<16x128xbf16>
    %cst_11 = arith.constant 0.000000e+00 : bf16
    %16 = vector.broadcast %cst_11 : bf16 to vector<16x128xbf16>
    %17 = arith.maximumf %15, %16 : vector<16x128xbf16>
    %c0_12 = arith.constant 0 : index
    %c0_13 = arith.constant 0 : index
    %18 = vector.load %arg6[%c0_12, %c0_13] : memref<128x128xbf16, #tpu.memory_space<vmem>>, vector<128x128xbf16>
    %cst_14 = arith.constant dense<0.000000e+00> : vector<16x128xf32>
    %19 = tpu.matmul %17, %18, %cst_14 {dimension_numbers = #tpu.dot_dimension_numbers<[1], [0], [0], [1], [0, 0, 1, 1], [], []>} : vector<16x128xbf16>, vector<128x128xbf16>, vector<16x128xf32> -> vector<16x128xf32>
    %20 = arith.truncf %19 : vector<16x128xf32> to vector<16x128xbf16>
    %c0_15 = arith.constant 0 : index
    %c0_16 = arith.constant 0 : index
    %21 = vector.load %arg7[%c0_15, %c0_16] : memref<1x128xbf16, #tpu.memory_space<vmem>>, vector<1x128xbf16>
    %22 = vector.broadcast %21 : vector<1x128xbf16> to vector<16x128xbf16>
    %23 = arith.addf %20, %22 : vector<16x128xbf16>
    %cst_17 = arith.constant 0.000000e+00 : bf16
    %24 = vector.broadcast %cst_17 : bf16 to vector<16x128xbf16>
    %25 = arith.maximumf %23, %24 : vector<16x128xbf16>
    %c0_18 = arith.constant 0 : index
    %c0_19 = arith.constant 0 : index
    %26 = vector.load %arg8[%c0_18, %c0_19] : memref<128x128xbf16, #tpu.memory_space<vmem>>, vector<128x128xbf16>
    %cst_20 = arith.constant dense<0.000000e+00> : vector<16x128xf32>
    %27 = tpu.matmul %25, %26, %cst_20 {dimension_numbers = #tpu.dot_dimension_numbers<[1], [0], [0], [1], [0, 0, 1, 1], [], []>} : vector<16x128xbf16>, vector<128x128xbf16>, vector<16x128xf32> -> vector<16x128xf32>
    %28 = arith.truncf %27 : vector<16x128xf32> to vector<16x128xbf16>
    %c0_21 = arith.constant 0 : index
    %c0_22 = arith.constant 0 : index
    %29 = vector.load %arg9[%c0_21, %c0_22] : memref<1x128xbf16, #tpu.memory_space<vmem>>, vector<1x128xbf16>
    %30 = vector.broadcast %29 : vector<1x128xbf16> to vector<16x128xbf16>
    %31 = arith.addf %28, %30 : vector<16x128xbf16>
    %32 = math.tanh %31 : vector<16x128xbf16>
    %33 = arith.extf %32 : vector<16x128xbf16> to vector<16x128xf32>
    %c0_23 = arith.constant 0 : index
    %c0_24 = arith.constant 0 : index
    %34 = vector.load %arg10[%c0_23, %c0_24] : memref<16x128xf32, #tpu.memory_space<vmem>>, vector<16x128xf32>
    tpu.vector_store %arg10[%c0_23, %c0_24], %33 {strides = array<i32>} : memref<16x128xf32, #tpu.memory_space<vmem>>, vector<16x128xf32>,
    return
  }
  func.func @transform_0(%arg0: i32) -> (i32, i32) {
    %c0_i32 = arith.constant 0 : i32
    %c0_i32_0 = arith.constant 0 : i32
    return %arg0, %c0_i32 : i32, i32
  }
  func.func @transform_1(%arg0: i32) -> (i32, i32) {
    %c0_i32 = arith.constant 0 : i32
    %c0_i32_0 = arith.constant 0 : i32
    %c0_i32_1 = arith.constant 0 : i32
    return %c0_i32, %c0_i32_0 : i32, i32
  }
  func.func @transform_2(%arg0: i32) -> (i32, i32) {
    %c0_i32 = arith.constant 0 : i32
    %c0_i32_0 = arith.constant 0 : i32
    %c0_i32_1 = arith.constant 0 : i32
    return %c0_i32, %c0_i32_0 : i32, i32
  }
  func.func @transform_3(%arg0: i32) -> (i32, i32) {
    %c0_i32 = arith.constant 0 : i32
    %c0_i32_0 = arith.constant 0 : i32
    %c0_i32_1 = arith.constant 0 : i32
    return %c0_i32, %c0_i32_0 : i32, i32
  }
  func.func @transform_4(%arg0: i32) -> (i32, i32) {
    %c0_i32 = arith.constant 0 : i32
    %c0_i32_0 = arith.constant 0 : i32
    %c0_i32_1 = arith.constant 0 : i32
    return %c0_i32, %c0_i32_0 : i32, i32
  }
  func.func @transform_5(%arg0: i32) -> (i32, i32) {
    %c0_i32 = arith.constant 0 : i32
    %c0_i32_0 = arith.constant 0 : i32
    %c0_i32_1 = arith.constant 0 : i32
    return %c0_i32, %c0_i32_0 : i32, i32
  }
  func.func @transform_6(%arg0: i32) -> (i32, i32) {
    %c0_i32 = arith.constant 0 : i32
    %c0_i32_0 = arith.constant 0 : i32
    %c0_i32_1 = arith.constant 0 : i32
    return %c0_i32, %c0_i32_0 : i32, i32
  }
  func.func @transform_7(%arg0: i32) -> (i32, i32) {
    %c0_i32 = arith.constant 0 : i32
    %c0_i32_0 = arith.constant 0 : i32
    %c0_i32_1 = arith.constant 0 : i32
    return %c0_i32, %c0_i32_0 : i32, i32
  }
  func.func @transform_8(%arg0: i32) -> (i32, i32) {
    %c0_i32 = arith.constant 0 : i32
    %c0_i32_0 = arith.constant 0 : i32
    %c0_i32_1 = arith.constant 0 : i32
    return %c0_i32, %c0_i32_0 : i32, i32
  }
  func.func @transform_9(%arg0: i32) -> (i32, i32) {
    %c0_i32 = arith.constant 0 : i32
    %c0_i32_0 = arith.constant 0 : i32
    return %arg0, %c0_i32 : i32, i32
  }
}

</mosaic_0001>

<llo_original>
// kernel: tpu_custom_call.1
$region0: #{tpu_custom_call.1}
  #allocation0 [shape = 'u32[]', space=smem, size = 0x4, offset = 0x4, fixed_abs, tag = 'smem constant byte address 0x4 - core index']
  #allocation1 [shape = 'u32[72,128]{1,0:T(1,128)}', space=vmem, size = 0x9000, scoped, tag = 'internal scratch']
  %s0 = inlined_call_operand.hbm [shape: f32[16,32], index: 0, kind: input, shape index: {}]
  %s1 = inlined_call_operand.hbm [shape: bf16[32,128], index: 1, kind: input, shape index: {}]
  %s2 = inlined_call_operand.vmem [shape: bf16[1,128], index: 2, kind: input, shape index: {}]
  %s3 = inlined_call_operand.hbm [shape: bf16[128,128], index: 3, kind: input, shape index: {}]
  %s4 = inlined_call_operand.vmem [shape: bf16[1,128], index: 4, kind: input, shape index: {}]
  %s5 = inlined_call_operand.hbm [shape: bf16[128,128], index: 5, kind: input, shape index: {}]
  %s6 = inlined_call_operand.vmem [shape: bf16[1,128], index: 6, kind: input, shape index: {}]
  %s7 = inlined_call_operand.hbm [shape: bf16[128,128], index: 7, kind: input, shape index: {}]
  %s8 = inlined_call_operand.vmem [shape: bf16[1,128], index: 8, kind: input, shape index: {}]
  %s9 = inlined_call_operand.hbm [shape: f32[16,128], index: 9, kind: output, shape index: {}]
  %s10 = sld [smem:[#allocation0]]
  $region66: #{tpu_custom_call.1} parent=0
    _
  %s12 = ssub.s32 1, %s10
  %s13 = scalar_select 0, %s12, %s10
  $region1: #{tpu_custom_call.1} parent=0
    #allocation2 [shape = 'u8[8192]{0}', space=vmem, size = 0x2000, scoped, tag = 'input window, operand 0, single buffered']
    #allocation3 [shape = 's32[1]{0}', space=sflag, size = 0x4, scoped, tag = 'scoped memory for tpu_custom_call.1']
    #allocation4 [shape = 's32[1]{0}', space=sflag, size = 0x4, scoped, tag = 'scoped memory for tpu_custom_call.1']
    #allocation5 [shape = 'u8[8192]{0}', space=vmem, size = 0x2000, scoped, tag = 'input window, operand 1, single buffered']
    #allocation6 [shape = 's32[1]{0}', space=sflag, size = 0x4, scoped, tag = 'scoped memory for tpu_custom_call.1']
    #allocation7 [shape = 'u8[32768]{0}', space=vmem, size = 0x8000, scoped, tag = 'input window, operand 3, single buffered']
    #allocation8 [shape = 'u8[32768]{0}', space=vmem, size = 0x8000, scoped, tag = 'input window, operand 5, single buffered']
    #allocation9 [shape = 's32[1]{0}', space=sflag, size = 0x4, scoped, tag = 'scoped memory for tpu_custom_call.1']
    #allocation10 [shape = 'u8[32768]{0}', space=vmem, size = 0x8000, scoped, tag = 'input window, operand 7, single buffered']
    #allocation11 [shape = 'u8[8192]{0}', space=vmem, size = 0x2000, scoped, tag = 'output window, operand 0, single buffered']
    %14 = vsyncpa [#allocation3], 0
    %15 = vsyncpa [#allocation6], 0
    %16 = vsyncpa [#allocation9], 0
    %17 = vsyncpa [#allocation4], 0
    // Predicated region
    $region2: #{tpu_custom_call.1} parent=1 // pred_check
      _
    $region3: #{tpu_custom_call.1} parent=1 // pred_check_branch
      %19 = sbr.rel (0) target = $region5
    $region4: #{tpu_custom_call.1} parent=1 // pred_region
      %21 = vsyncadd [#allocation3], 0
      %s22 = sshll.u32 %s0, 4
      %s23 = int_to_ptr.hbm [resolvable:$true] %s22
      %s24 = sshll.u32 [#allocation2], 4
      %s25 = int_to_ptr.vmem [resolvable:$true] %s24
      %30 = dma.hbm_to_vmem [thread:$0]  %s23, 256, %s25, [#allocation3], 128, 128, 8
    $region5: #{tpu_custom_call.1} parent=1 // pred_fallthru
      _
    // Predicated region
    $region6: #{tpu_custom_call.1} parent=1 // pred_check
      _
    $region7: #{tpu_custom_call.1} parent=1 // pred_check_branch
      %32 = sbr.rel (0) target = $region9
    $region8: #{tpu_custom_call.1} parent=1 // pred_region
      %34 = vsyncadd [#allocation6], 0
      %s35 = sshll.u32 %s1, 4
      %s36 = int_to_ptr.hbm [resolvable:$true] %s35
      %s37 = sshll.u32 [#allocation5], 4
      %s38 = int_to_ptr.vmem [resolvable:$true] %s37
      %43 = dma.hbm_to_vmem [thread:$0]  %s36, 256, %s38, [#allocation6], 64, 64, 4
    $region9: #{tpu_custom_call.1} parent=1 // pred_fallthru
      _
    // Predicated region
    $region10: #{tpu_custom_call.1} parent=1 // pred_check
      _
    $region11: #{tpu_custom_call.1} parent=1 // pred_check_branch
      %45 = sbr.rel (0) target = $region13
    $region12: #{tpu_custom_call.1} parent=1 // pred_region
      _
    $region13: #{tpu_custom_call.1} parent=1 // pred_fallthru
      _
    // Predicated region
    $region14: #{tpu_custom_call.1} parent=1 // pred_check
      _
    $region15: #{tpu_custom_call.1} parent=1 // pred_check_branch
      %47 = sbr.rel (0) target = $region17
    $region16: #{tpu_custom_call.1} parent=1 // pred_region
      %49 = vsyncadd [#allocation6], 0
      %s50 = sshll.u32 %s3, 4
      %s51 = int_to_ptr.hbm [resolvable:$true] %s50
      %s52 = sshll.u32 [#allocation7], 4
      %s53 = int_to_ptr.vmem [resolvable:$true] %s52
      %58 = dma.hbm_to_vmem [thread:$0]  %s51, 1024, %s53, [#allocation6], 64, 64, 4
    $region17: #{tpu_custom_call.1} parent=1 // pred_fallthru
      _
    // Predicated region
    $region18: #{tpu_custom_call.1} parent=1 // pred_check
      _
    $region19: #{tpu_custom_call.1} parent=1 // pred_check_branch
      %60 = sbr.rel (0) target = $region21
    $region20: #{tpu_custom_call.1} parent=1 // pred_region
      _
    $region21: #{tpu_custom_call.1} parent=1 // pred_fallthru
      _
    // Predicated region
    $region22: #{tpu_custom_call.1} parent=1 // pred_check
      _
    $region23: #{tpu_custom_call.1} parent=1 // pred_check_branch
      %62 = sbr.rel (0) target = $region25
    $region24: #{tpu_custom_call.1} parent=1 // pred_region
      %64 = vsyncadd [#allocation9], 0
      %s65 = sshll.u32 %s5, 4
      %s66 = int_to_ptr.hbm [resolvable:$true] %s65
      %s67 = sshll.u32 [#allocation8], 4
      %s68 = int_to_ptr.vmem [resolvable:$true] %s67
      %73 = dma.hbm_to_vmem [thread:$0]  %s66, 1024, %s68, [#allocation9], 64, 64, 4
    $region25: #{tpu_custom_call.1} parent=1 // pred_fallthru
      _
    // Predicated region
    $region26: #{tpu_custom_call.1} parent=1 // pred_check
      _
    $region27: #{tpu_custom_call.1} parent=1 // pred_check_branch
      %75 = sbr.rel (0) target = $region29
    $region28: #{tpu_custom_call.1} parent=1 // pred_region
      _
    $region29: #{tpu_custom_call.1} parent=1 // pred_fallthru
      _
    // Predicated region
    $region30: #{tpu_custom_call.1} parent=1 // pred_check
      _
    $region31: #{tpu_custom_call.1} parent=1 // pred_check_branch
      %77 = sbr.rel (0) target = $region33
    $region32: #{tpu_custom_call.1} parent=1 // pred_region
      %79 = vsyncadd [#allocation9], 0
      %s80 = sshll.u32 %s7, 4
      %s81 = int_to_ptr.hbm [resolvable:$true] %s80
      %s82 = sshll.u32 [#allocation10], 4
      %s83 = int_to_ptr.vmem [resolvable:$true] %s82
      %88 = dma.hbm_to_vmem [thread:$0]  %s81, 1024, %s83, [#allocation9], 64, 64, 4
    $region33: #{tpu_custom_call.1} parent=1 // pred_fallthru
      _
    // Predicated region
    $region34: #{tpu_custom_call.1} parent=1 // pred_check
      _
    $region35: #{tpu_custom_call.1} parent=1 // pred_check_branch
      %90 = sbr.rel (0) target = $region37
    $region36: #{tpu_custom_call.1} parent=1 // pred_region
      _
    $region37: #{tpu_custom_call.1} parent=1 // pred_fallthru
      _
    // Predicated region
    $region38: #{tpu_custom_call.1} parent=1 // pred_check
      _
    $region39: #{tpu_custom_call.1} parent=1 // pred_check_branch
      %92 = sbr.rel (0) target = $region41
    $region40: #{tpu_custom_call.1} parent=1 // pred_region
      %94 = dma.done [#allocation3], 256
    $region41: #{tpu_custom_call.1} parent=1 // pred_fallthru
      _
    // Predicated region
    $region42: #{tpu_custom_call.1} parent=1 // pred_check
      _
    $region43: #{tpu_custom_call.1} parent=1 // pred_check_branch
      %96 = sbr.rel (0) target = $region45
    $region44: #{tpu_custom_call.1} parent=1 // pred_region
      %98 = dma.done [#allocation6], 256
    $region45: #{tpu_custom_call.1} parent=1 // pred_fallthru
      _
    // Predicated region
    $region46: #{tpu_custom_call.1} parent=1 // pred_check
      _
    $region47: #{tpu_custom_call.1} parent=1 // pred_check_branch
      %100 = sbr.rel (0) target = $region49
    $region48: #{tpu_custom_call.1} parent=1 // pred_region
      %102 = dma.done [#allocation6], 1024
    $region49: #{tpu_custom_call.1} parent=1 // pred_fallthru
      _
    // Predicated region
    $region50: #{tpu_custom_call.1} parent=1 // pred_check
      _
    $region51: #{tpu_custom_call.1} parent=1 // pred_check_branch
      %104 = sbr.rel (0) target = $region53
    $region52: #{tpu_custom_call.1} parent=1 // pred_region
      %106 = dma.done [#allocation9], 1024
    $region53: #{tpu_custom_call.1} parent=1 // pred_fallthru
      _
    // Predicated region
    $region54: #{tpu_custom_call.1} parent=1 // pred_check
      _
    $region55: #{tpu_custom_call.1} parent=1 // pred_check_branch
      %108 = sbr.rel (0) target = $region57
    $region56: #{tpu_custom_call.1} parent=1 // pred_region
      %110 = dma.done [#allocation9], 1024
    $region57: #{tpu_custom_call.1} parent=1 // pred_fallthru
      _
    %v112 = vld [vmem:[#allocation2] sm:$0xff]
    %v113 = vld [vmem:[#allocation2 + $0x8] sm:$0xff]
    %v114 = vpack.c.bf16 %v113, %v112
    %v115 = vld [vmem:[#allocation5] sm:$0xf]
    %v116 = vld [vmem:[#allocation5 + $0x4] sm:$0xf]
    %v117 = vld [vmem:[#allocation5 + $0x8] sm:$0xf]
    %v118 = vld [vmem:[#allocation5 + $0xc] sm:$0xf]
    %v123 = vunpack.c.l.b16 %v115
    %v124 = vunpack.c.l.b16 %v116
    %v125 = vunpack.c.l.b16 %v117
    %v126 = vunpack.c.l.b16 %v118
    %v127 = vpack.c.b16 %v124, %v123
    %v128 = vpack.c.b16 %v126, %v125
    %vm131 = vcmask 261120
    %v133 = vsel %vm131, %v114, 0
    %135 = vmatpush.bf16.msra.mxu0 0
    %136 = vmatpush.bf16.msra.mxu0 0
    %137 = vmatpush.bf16.msra.mxu0 0
    %138 = vmatpush.bf16.msra.mxu0 0
    %139 = vmatpush.bf16.msra.mxu0 0
    %140 = vmatpush.bf16.msra.mxu0 0
    %141 = vmatpush.bf16.msra.mxu0 %v128
    %142 = vmatpush.bf16.msra.mxu0 %v127
    %143 = vmatmul.bf16.gmra.mxu0 %v133
    %v144 = vpop.f32.mrf.mxu0
    %v145 = vadd.f32 0.0, %v144
    %v146 = vpop.f32.mrf.mxu0
    %v147 = vadd.f32 0.0, %v146
    %148 = vdwg.mxu0
    %v149 = vpack.c.bf16 %v145, %v145
    %v150 = vpack.c.bf16 %v147, %v147
    %v151 = vld [vmem:[%s2] sm:$0x1]
    %v153 = vpack.i.b16 %v151, %v151
    %v155 = vperm.slane %v153, 0
    %v156 = vunpack.c.l.bf16 %v149
    %v157 = vunpack.c.l.bf16 %v150
    %v158 = vunpack.c.l.bf16 %v155
    %v159 = vadd.f32 %v156, %v158
    %v160 = vadd.f32 %v157, %v158
    %v161 = vpack.c.bf16 %v159, %v159
    %v162 = vpack.c.bf16 %v160, %v160
    %v163 = vunpack.c.l.bf16 %v161
    %v164 = vunpack.c.l.bf16 %v162
    %v165 = vmax.f32 %v163, 0.0
    %v166 = vmax.f32 %v164, 0.0
    %v167 = vpack.c.bf16 %v166, %v165
    %v168 = vld [vmem:[#allocation7] sm:$0xf]
    %v169 = vld [vmem:[#allocation7 + $0x4] sm:$0xf]
    %v170 = vld [vmem:[#allocation7 + $0x8] sm:$0xf]
    %v171 = vld [vmem:[#allocation7 + $0xc] sm:$0xf]
    %v172 = vld [vmem:[#allocation7 + $0x10] sm:$0xf]
    %v173 = vld [vmem:[#allocation7 + $0x14] sm:$0xf]
    %v174 = vld [vmem:[#allocation7 + $0x18] sm:$0xf]
    %v175 = vld [vmem:[#allocation7 + $0x1c] sm:$0xf]
    %v176 = vld [vmem:[#allocation7 + $0x20] sm:$0xf]
    %v177 = vld [vmem:[#allocation7 + $0x24] sm:$0xf]
    %v178 = vld [vmem:[#allocation7 + $0x28] sm:$0xf]
    %v179 = vld [vmem:[#allocation7 + $0x2c] sm:$0xf]
    %v180 = vld [vmem:[#allocation7 + $0x30] sm:$0xf]
    %v181 = vld [vmem:[#allocation7 + $0x34] sm:$0xf]
    %v182 = vld [vmem:[#allocation7 + $0x38] sm:$0xf]
    %v183 = vld [vmem:[#allocation7 + $0x3c] sm:$0xf]
    %v200 = vunpack.c.l.b16 %v168
    %v201 = vunpack.c.l.b16 %v169
    %v202 = vunpack.c.l.b16 %v170
    %v203 = vunpack.c.l.b16 %v171
    %v204 = vunpack.c.l.b16 %v172
    %v205 = vunpack.c.l.b16 %v173
    %v206 = vunpack.c.l.b16 %v174
    %v207 = vunpack.c.l.b16 %v175
    %v208 = vunpack.c.l.b16 %v176
    %v209 = vunpack.c.l.b16 %v177
    %v210 = vunpack.c.l.b16 %v178
    %v211 = vunpack.c.l.b16 %v179
    %v212 = vunpack.c.l.b16 %v180
    %v213 = vunpack.c.l.b16 %v181
    %v214 = vunpack.c.l.b16 %v182
    %v215 = vunpack.c.l.b16 %v183
    %v216 = vpack.c.b16 %v201, %v200
    %v217 = vpack.c.b16 %v203, %v202
    %v218 = vpack.c.b16 %v205, %v204
    %v219 = vpack.c.b16 %v207, %v206
    %v220 = vpack.c.b16 %v209, %v208
    %v221 = vpack.c.b16 %v211, %v210
    %v222 = vpack.c.b16 %v213, %v212
    %v223 = vpack.c.b16 %v215, %v214
    %232 = vmatpush.bf16.msra.mxu0 %v223
    %233 = vmatpush.bf16.msra.mxu0 %v222
    %234 = vmatpush.bf16.msra.mxu0 %v221
    %235 = vmatpush.bf16.msra.mxu0 %v220
    %236 = vmatpush.bf16.msra.mxu0 %v219
    %237 = vmatpush.bf16.msra.mxu0 %v218
    %238 = vmatpush.bf16.msra.mxu0 %v217
    %239 = vmatpush.bf16.msra.mxu0 %v216
    %240 = vmatmul.bf16.gmra.mxu0 %v167
    %v241 = vpop.f32.mrf.mxu0
    %v242 = vadd.f32 0.0, %v241
    %v243 = vpop.f32.mrf.mxu0
    %v244 = vadd.f32 0.0, %v243
    %245 = vdwg.mxu0
    %v246 = vpack.c.bf16 %v242, %v242
    %v247 = vpack.c.bf16 %v244, %v244
    %v248 = vld [vmem:[%s4] sm:$0x1]
    %v250 = vpack.i.b16 %v248, %v248
    %v252 = vperm.slane %v250, 0
    %v253 = vunpack.c.l.bf16 %v246
    %v254 = vunpack.c.l.bf16 %v247
    %v255 = vunpack.c.l.bf16 %v252
    %v256 = vadd.f32 %v253, %v255
    %v257 = vadd.f32 %v254, %v255
    %v258 = vpack.c.bf16 %v256, %v256
    %v259 = vpack.c.bf16 %v257, %v257
    %v260 = vunpack.c.l.bf16 %v258
    %v261 = vunpack.c.l.bf16 %v259
    %v262 = vmax.f32 %v260, 0.0
    %v263 = vmax.f32 %v261, 0.0
    %v264 = vpack.c.bf16 %v263, %v262
    %v265 = vld [vmem:[#allocation8] sm:$0xf]
    %v266 = vld [vmem:[#allocation8 + $0x4] sm:$0xf]
    %v267 = vld [vmem:[#allocation8 + $0x8] sm:$0xf]
    %v268 = vld [vmem:[#allocation8 + $0xc] sm:$0xf]
    %v269 = vld [vmem:[#allocation8 + $0x10] sm:$0xf]
    %v270 = vld [vmem:[#allocation8 + $0x14] sm:$0xf]
    %v271 = vld [vmem:[#allocation8 + $0x18] sm:$0xf]
    %v272 = vld [vmem:[#allocation8 + $0x1c] sm:$0xf]
    %v273 = vld [vmem:[#allocation8 + $0x20] sm:$0xf]
    %v274 = vld [vmem:[#allocation8 + $0x24] sm:$0xf]
    %v275 = vld [vmem:[#allocation8 + $0x28] sm:$0xf]
    %v276 = vld [vmem:[#allocation8 + $0x2c] sm:$0xf]
    %v277 = vld [vmem:[#allocation8 + $0x30] sm:$0xf]
    %v278 = vld [vmem:[#allocation8 + $0x34] sm:$0xf]
    %v279 = vld [vmem:[#allocation8 + $0x38] sm:$0xf]
    %v280 = vld [vmem:[#allocation8 + $0x3c] sm:$0xf]
    %v297 = vunpack.c.l.b16 %v265
    %v298 = vunpack.c.l.b16 %v266
    %v299 = vunpack.c.l.b16 %v267
    %v300 = vunpack.c.l.b16 %v268
    %v301 = vunpack.c.l.b16 %v269
    %v302 = vunpack.c.l.b16 %v270
    %v303 = vunpack.c.l.b16 %v271
    %v304 = vunpack.c.l.b16 %v272
    %v305 = vunpack.c.l.b16 %v273
    %v306 = vunpack.c.l.b16 %v274
    %v307 = vunpack.c.l.b16 %v275
    %v308 = vunpack.c.l.b16 %v276
    %v309 = vunpack.c.l.b16 %v277
    %v310 = vunpack.c.l.b16 %v278
    %v311 = vunpack.c.l.b16 %v279
    %v312 = vunpack.c.l.b16 %v280
    %v313 = vpack.c.b16 %v298, %v297
    %v314 = vpack.c.b16 %v300, %v299
    %v315 = vpack.c.b16 %v302, %v301
    %v316 = vpack.c.b16 %v304, %v303
    %v317 = vpack.c.b16 %v306, %v305
    %v318 = vpack.c.b16 %v308, %v307
    %v319 = vpack.c.b16 %v310, %v309
    %v320 = vpack.c.b16 %v312, %v311
    %329 = vmatpush.bf16.msra.mxu0 %v320
    %330 = vmatpush.bf16.msra.mxu0 %v319
    %331 = vmatpush.bf16.msra.mxu0 %v318
    %332 = vmatpush.bf16.msra.mxu0 %v317
    %333 = vmatpush.bf16.msra.mxu0 %v316
    %334 = vmatpush.bf16.msra.mxu0 %v315
    %335 = vmatpush.bf16.msra.mxu0 %v314
    %336 = vmatpush.bf16.msra.mxu0 %v313
    %337 = vmatmul.bf16.gmra.mxu0 %v264
    %v338 = vpop.f32.mrf.mxu0
    %v339 = vadd.f32 0.0, %v338
    %v340 = vpop.f32.mrf.mxu0
    %v341 = vadd.f32 0.0, %v340
    %342 = vdwg.mxu0
    %v343 = vpack.c.bf16 %v339, %v339
    %v344 = vpack.c.bf16 %v341, %v341
    %v345 = vld [vmem:[%s6] sm:$0x1]
    %v347 = vpack.i.b16 %v345, %v345
    %v349 = vperm.slane %v347, 0
    %v350 = vunpack.c.l.bf16 %v343
    %v351 = vunpack.c.l.bf16 %v344
    %v352 = vunpack.c.l.bf16 %v349
    %v353 = vadd.f32 %v350, %v352
    %v354 = vadd.f32 %v351, %v352
    %v355 = vpack.c.bf16 %v353, %v353
    %v356 = vpack.c.bf16 %v354, %v354
    %v357 = vunpack.c.l.bf16 %v355
    %v358 = vunpack.c.l.bf16 %v356
    %v359 = vmax.f32 %v357, 0.0
    %v360 = vmax.f32 %v358, 0.0
    %v361 = vpack.c.bf16 %v360, %v359
    %v362 = vld [vmem:[#allocation10] sm:$0xf]
    %v363 = vld [vmem:[#allocation10 + $0x4] sm:$0xf]
    %v364 = vld [vmem:[#allocation10 + $0x8] sm:$0xf]
    %v365 = vld [vmem:[#allocation10 + $0xc] sm:$0xf]
    %v366 = vld [vmem:[#allocation10 + $0x10] sm:$0xf]
    %v367 = vld [vmem:[#allocation10 + $0x14] sm:$0xf]
    %v368 = vld [vmem:[#allocation10 + $0x18] sm:$0xf]
    %v369 = vld [vmem:[#allocation10 + $0x1c] sm:$0xf]
    %v370 = vld [vmem:[#allocation10 + $0x20] sm:$0xf]
    %v371 = vld [vmem:[#allocation10 + $0x24] sm:$0xf]
    %v372 = vld [vmem:[#allocation10 + $0x28] sm:$0xf]
    %v373 = vld [vmem:[#allocation10 + $0x2c] sm:$0xf]
    %v374 = vld [vmem:[#allocation10 + $0x30] sm:$0xf]
    %v375 = vld [vmem:[#allocation10 + $0x34] sm:$0xf]
    %v376 = vld [vmem:[#allocation10 + $0x38] sm:$0xf]
    %v377 = vld [vmem:[#allocation10 + $0x3c] sm:$0xf]
    %v394 = vunpack.c.l.b16 %v362
    %v395 = vunpack.c.l.b16 %v363
    %v396 = vunpack.c.l.b16 %v364
    %v397 = vunpack.c.l.b16 %v365
    %v398 = vunpack.c.l.b16 %v366
    %v399 = vunpack.c.l.b16 %v367
    %v400 = vunpack.c.l.b16 %v368
    %v401 = vunpack.c.l.b16 %v369
    %v402 = vunpack.c.l.b16 %v370
    %v403 = vunpack.c.l.b16 %v371
    %v404 = vunpack.c.l.b16 %v372
    %v405 = vunpack.c.l.b16 %v373
    %v406 = vunpack.c.l.b16 %v374
    %v407 = vunpack.c.l.b16 %v375
    %v408 = vunpack.c.l.b16 %v376
    %v409 = vunpack.c.l.b16 %v377
    %v410 = vpack.c.b16 %v395, %v394
    %v411 = vpack.c.b16 %v397, %v396
    %v412 = vpack.c.b16 %v399, %v398
    %v413 = vpack.c.b16 %v401, %v400
    %v414 = vpack.c.b16 %v403, %v402
    %v415 = vpack.c.b16 %v405, %v404
    %v416 = vpack.c.b16 %v407, %v406
    %v417 = vpack.c.b16 %v409, %v408
    %426 = vmatpush.bf16.msra.mxu0 %v417
    %427 = vmatpush.bf16.msra.mxu0 %v416
    %428 = vmatpush.bf16.msra.mxu0 %v415
    %429 = vmatpush.bf16.msra.mxu0 %v414
    %430 = vmatpush.bf16.msra.mxu0 %v413
    %431 = vmatpush.bf16.msra.mxu0 %v412
    %432 = vmatpush.bf16.msra.mxu0 %v411
    %433 = vmatpush.bf16.msra.mxu0 %v410
    %434 = vmatmul.bf16.gmra.mxu0 %v361
    %v435 = vpop.f32.mrf.mxu0
    %v436 = vadd.f32 0.0, %v435
    %v437 = vpop.f32.mrf.mxu0
    %v438 = vadd.f32 0.0, %v437
    %439 = vdwg.mxu0
    %v440 = vpack.c.bf16 %v436, %v436
    %v441 = vpack.c.bf16 %v438, %v438
    %v442 = vld [vmem:[%s8] sm:$0x1]
    %v444 = vpack.i.b16 %v442, %v442
    %v446 = vperm.slane %v444, 0
    %v447 = vunpack.c.l.bf16 %v440
    %v448 = vunpack.c.l.bf16 %v441
    %v449 = vunpack.c.l.bf16 %v446
    %v450 = vadd.f32 %v447, %v449
    %v451 = vadd.f32 %v448, %v449
    %v452 = vpack.c.bf16 %v450, %v450
    %v453 = vpack.c.bf16 %v451, %v451
    %v454 = vunpack.c.l.bf16 %v452
    %v455 = vunpack.c.l.bf16 %v453
    %v456 = vtanh.pop %v454
    %v457 = vtanh.pop %v455
    %v458 = vpack.c.bf16 %v456, %v456
    %v459 = vpack.c.bf16 %v457, %v457
    %v460 = vunpack.c.l.bf16 %v458
    %v461 = vunpack.c.l.bf16 %v459
    %462 = vst [vmem:[#allocation11] sm:$0xff] %v460
    %463 = vst [vmem:[#allocation11 + $0x8] sm:$0xff] %v461
    // Predicated region
    $region58: #{tpu_custom_call.1} parent=1 // pred_check
      _
    $region59: #{tpu_custom_call.1} parent=1 // pred_check_branch
      %465 = sbr.rel (0) target = $region61
    $region60: #{tpu_custom_call.1} parent=1 // pred_region
      %467 = vsyncadd [#allocation4], 0
      %s468 = sshll.u32 [#allocation11], 4
      %s469 = int_to_ptr.vmem [resolvable:$true] %s468
      %s470 = sshll.u32 %s9, 4
      %s471 = int_to_ptr.hbm [resolvable:$true] %s470
      %476 = dma.vmem_to_hbm [thread:$0]  %s469, 256, %s471, [#allocation4], 128, 128, 8
    $region61: #{tpu_custom_call.1} parent=1 // pred_fallthru
      _
    // Predicated region
    $region62: #{tpu_custom_call.1} parent=1 // pred_check
      _
    $region63: #{tpu_custom_call.1} parent=1 // pred_check_branch
      %478 = sbr.rel (0) target = $region65
    $region64: #{tpu_custom_call.1} parent=1 // pred_region
      %480 = dma.done [#allocation4], 256
    $region65: #{tpu_custom_call.1} parent=1 // pred_fallthru
      _
    %481 = vsyncpa [#allocation3], 1
    %482 = vsyncpa [#allocation6], 1
    %483 = vsyncpa [#allocation9], 1
    %484 = vsyncpa [#allocation4], 1

</llo_original>
